<compile_context>
chip_gen: v5e
topology: v5e:2x2
jax: 0.10.0
libtpu: 0.0.40
codegen_flags: <defaults>
</compile_context>

<pallas_src>
import jax
import jax.numpy as jnp
from jax.experimental import pallas as pl
from jax.experimental.pallas import tpu as pltpu

# ---------------- model hyper-parameters (Iris) ----------------
NUM_FLOWS = 4        # number of affine-coupling flow layers
D = 4                # Iris feature dimension
DH = D // 2          # half-dim (conditioning / transformed split)
H = 32               # hidden width of each coupling MLP
B = 8                # batch size for the example run
OUT_ROWS = 8         # sublane-dense output slab: rows 0..3 = z, row 4 = logdet


def _round_up(n, m):
    return ((n + m - 1) // m) * m


def _flow_stack_kernel(x_ref, w1t_ref, b1t_ref, w2t_ref, b2t_ref, out_ref):
    """All NUM_FLOWS coupling layers + log-det for one batch-column tile.

    Batch-in-lanes layout: every activation is (feature, batch_tile).

    x_ref   : (D, TB)        transposed input columns for this grid step
    w1t_ref : (F, H, DH)     first Linear of each coupling MLP (transposed)
    b1t_ref : (F, H, 1)
    w2t_ref : (F, 2*DH, H)   second Linear, s and t heads fused (transposed)
    b2t_ref : (F, 2*DH, 1)
    out_ref : (OUT_ROWS, TB) rows [0:D) = z, row D = log_det_J, rest zero
    """
    x = x_ref[...].astype(jnp.float32)            # (D, TB)
    tb = x.shape[1]

    # Carry the two feature halves as separate registers (no concat in loop).
    xa = x[:DH, :]                                # (DH, TB)  features 0,1
    xb = x[DH:, :]                                # (DH, TB)  features 2,3
    logdet = jnp.zeros((1, tb), jnp.float32)      # (1, TB)

    for f in range(NUM_FLOWS):
        cond, trans = (xa, xb) if f % 2 == 0 else (xb, xa)

        # ---- first Linear (K = DH = 2): VPU broadcast-FMAs, skip the MXU ----
        w1f = w1t_ref[f]                          # (H, DH)
        h = (w1f[:, 0:1] * cond[0:1, :]
             + w1f[:, 1:2] * cond[1:2, :]
             + b1t_ref[f])                        # (H, TB), full-lane vregs
        h = jnp.maximum(h, 0.0)                   # ReLU on the VPU

        # ---- second Linear, fused s/t heads: one (2*DH,H)@(H,TB) matmul ----
        st = jnp.dot(w2t_ref[f], h,
                     preferred_element_type=jnp.float32) + b2t_ref[f]  # (4,TB)
        s = jnp.tanh(st[:DH, :])                  # (DH, TB)  log-scale (EUP)
        t = st[DH:, :]                            # (DH, TB)  translation

        y = trans * jnp.exp(s) + t                # affine coupling (EUP exp)
        logdet = logdet + s[0:1, :] + s[1:2, :]   # 2-row sum via cheap slices

        if f % 2 == 0:
            xb = y
        else:
            xa = y

    # Sublane-dense 8-row output slab -> one full, unmasked tile store.
    pad = jnp.zeros((OUT_ROWS - D - 1, tb), jnp.float32)
    out_ref[...] = jnp.concatenate([xa, xb, logdet, pad], axis=0)


def normalizing_flow_forward(x, w1, b1, w2, b2, block_cols=None):
    """Pallas wrapper: returns (z, log_det_J) with log_det_J of shape (batch,)."""
    batch = x.shape[0]

    # Wrapper-side layout plumbing: feature-major (transposed) params & input.
    w1t = jnp.transpose(w1, (0, 2, 1))            # (F, H, DH)
    b1t = jnp.transpose(b1, (0, 2, 1))            # (F, H, 1)
    w2t = jnp.transpose(w2, (0, 2, 1))            # (F, 2*DH, H)
    b2t = jnp.transpose(b2, (0, 2, 1))            # (F, 2*DH, 1)

    # Batch-column tile: multiple of 128 lanes; capped so real batches produce
    # >= 2 grid steps (feeds both v7x TensorCores) and the live set stays in
    # registers.  Larger cap for very large batches to amortize step overhead.
    if block_cols is None:
        block_cols = 256 if batch <= 1024 else 512
        block_cols = min(block_cols, _round_up(batch, 128))
    batch_pad = _round_up(batch, block_cols)

    xt = jnp.transpose(x.astype(jnp.float32))     # (D, batch): contiguous rows
    if batch_pad != batch:
        xt = jnp.pad(xt, ((0, 0), (0, batch_pad - batch)))
    grid = (batch_pad // block_cols,)

    def _full(shape):
        # Whole-array block, same block every grid step -> stays VMEM-resident.
        return pl.BlockSpec(shape, lambda i, _n=len(shape): (0,) * _n)

    out = pl.pallas_call(
        _flow_stack_kernel,
        out_shape=jax.ShapeDtypeStruct((OUT_ROWS, batch_pad), jnp.float32),
        grid_spec=pltpu.PrefetchScalarGridSpec(
            num_scalar_prefetch=0,
            grid=grid,
            in_specs=[
                pl.BlockSpec((D, block_cols), lambda i: (0, i)),   # x.T tile
                _full(w1t.shape), _full(b1t.shape),
                _full(w2t.shape), _full(b2t.shape),
            ],
            out_specs=pl.BlockSpec((OUT_ROWS, block_cols), lambda i: (0, i)),
        ),
        compiler_params=pltpu.CompilerParams(
            dimension_semantics=("parallel",)),   # shard batch across TCs
    )(xt, w1t, b1t, w2t, b2t)

    z = jnp.transpose(out[:D, :batch])            # (batch, D)
    log_det_J = out[D, :batch]                    # (batch,)
    return z, log_det_J


def reference_forward(x, w1, b1, w2, b2):
    """Pure-JAX reference of the same forward pass (for correctness check)."""
    x = x.astype(jnp.float32)
    logdet = jnp.zeros((x.shape[0],), jnp.float32)
    for f in range(NUM_FLOWS):
        if f % 2 == 0:
            x_cond, x_trans = x[:, :DH], x[:, DH:]
        else:
            x_cond, x_trans = x[:, DH:], x[:, :DH]
        h = jnp.maximum(x_cond @ w1[f] + b1[f, 0], 0.0)
        st = h @ w2[f] + b2[f, 0]
        s = jnp.tanh(st[:, :DH])
        t = st[:, DH:]
        y = x_trans * jnp.exp(s) + t
        logdet = logdet + jnp.sum(s, axis=-1)
        x = jnp.concatenate([x_cond, y], -1) if f % 2 == 0 else jnp.concatenate([y, x_cond], -1)
    return x, logdet


if __name__ == "__main__":
    key = jax.random.PRNGKey(0)
    k_x, k_w1, k_b1, k_w2, k_b2 = jax.random.split(key, 5)

    # Deterministic synthetic parameters (no checkpoint load).
    x = jax.random.normal(k_x, (B, D), dtype=jnp.float32)
    w1 = 0.3 * jax.random.normal(k_w1, (NUM_FLOWS, DH, H), dtype=jnp.float32)
    b1 = 0.1 * jax.random.normal(k_b1, (NUM_FLOWS, 1, H), dtype=jnp.float32)
    w2 = 0.3 * jax.random.normal(k_w2, (NUM_FLOWS, H, 2 * DH), dtype=jnp.float32)
    b2 = 0.1 * jax.random.normal(k_b2, (NUM_FLOWS, 1, 2 * DH), dtype=jnp.float32)

    z, log_det_J = normalizing_flow_forward(x, w1, b1, w2, b2)
    jax.block_until_ready((z, log_det_J))

    z_ref, ld_ref = reference_forward(x, w1, b1, w2, b2)
    assert z.shape == (B, D) and log_det_J.shape == (B,)
    assert jnp.allclose(z, z_ref, rtol=1e-3, atol=1e-3)
    assert jnp.allclose(log_det_J, ld_ref, rtol=1e-3, atol=1e-3)

    # TODO(synk): decode()/generate()/compute_loss() (inverse flows, prior
    # sampling, loss) are not part of forward() and are not implemented here.
    print("KERNEL_OK")
</pallas_src>

<mosaic_0001>
module attributes {stable_mosaic.version = 11 : i64} {
  func.func @_flow_stack_kernel(%arg0: i32, %arg1: memref<4x128xf32, #tpu.memory_space<vmem>>, %arg2: memref<4x32x2xf32, #tpu.memory_space<vmem>>, %arg3: memref<4x32x1xf32, #tpu.memory_space<vmem>>, %arg4: memref<4x4x32xf32, #tpu.memory_space<vmem>>, %arg5: memref<4x4x1xf32, #tpu.memory_space<vmem>>, %arg6: memref<8x128xf32, #tpu.memory_space<vmem>>) attributes {dimension_semantics = [#tpu.dimension_semantics<parallel>], iteration_bounds = array<i64: 1>, scalar_prefetch = 0 : i64, scratch_operands = 0 : i64, tpu.core_type = #tpu.core_type<tc>, window_params = [{transform_indices = @transform_0, window_bounds = array<i64: 4, 128>}, {pipeline_mode = #tpu.pipeline_mode<synchronous>, transform_indices = @transform_1, window_bounds = array<i64: 4, 32, 2>}, {pipeline_mode = #tpu.pipeline_mode<synchronous>, transform_indices = @transform_2, window_bounds = array<i64: 4, 32, 1>}, {pipeline_mode = #tpu.pipeline_mode<synchronous>, transform_indices = @transform_3, window_bounds = array<i64: 4, 4, 32>}, {pipeline_mode = #tpu.pipeline_mode<synchronous>, transform_indices = @transform_4, window_bounds = array<i64: 4, 4, 1>}, {transform_indices = @transform_5, window_bounds = array<i64: 8, 128>}]} {
    %c0 = arith.constant 0 : index
    %c0_0 = arith.constant 0 : index
    %0 = vector.load %arg1[%c0, %c0_0] : memref<4x128xf32, #tpu.memory_space<vmem>>, vector<4x128xf32>
    %1 = vector.extract_strided_slice %0 {offsets = [0, 0], sizes = [2, 128], strides = [1, 1]} : vector<4x128xf32> to vector<2x128xf32>
    %2 = vector.extract_strided_slice %0 {offsets = [2, 0], sizes = [2, 128], strides = [1, 1]} : vector<4x128xf32> to vector<2x128xf32>
    %cst = arith.constant 0.000000e+00 : f32
    %3 = vector.broadcast %cst : f32 to vector<1x128xf32>
    %c0_1 = arith.constant 0 : index
    %c0_2 = arith.constant 0 : index
    %c0_3 = arith.constant 0 : index
    %4 = vector.load %arg2[%c0_1, %c0_2, %c0_3] : memref<4x32x2xf32, #tpu.memory_space<vmem>>, vector<1x32x2xf32>
    %5 = vector.shape_cast %4 : vector<1x32x2xf32> to vector<32x2xf32>
    %6 = vector.extract_strided_slice %5 {offsets = [0, 0], sizes = [32, 1], strides = [1, 1]} : vector<32x2xf32> to vector<32x1xf32>
    %7 = vector.extract_strided_slice %1 {offsets = [0, 0], sizes = [1, 128], strides = [1, 1]} : vector<2x128xf32> to vector<1x128xf32>
    %8 = vector.broadcast %6 : vector<32x1xf32> to vector<32x128xf32>
    %9 = vector.broadcast %7 : vector<1x128xf32> to vector<32x128xf32>
    %10 = arith.mulf %8, %9 : vector<32x128xf32>
    %11 = vector.extract_strided_slice %5 {offsets = [0, 1], sizes = [32, 1], strides = [1, 1]} : vector<32x2xf32> to vector<32x1xf32>
    %12 = vector.extract_strided_slice %1 {offsets = [1, 0], sizes = [1, 128], strides = [1, 1]} : vector<2x128xf32> to vector<1x128xf32>
    %13 = vector.broadcast %11 : vector<32x1xf32> to vector<32x128xf32>
    %14 = vector.broadcast %12 : vector<1x128xf32> to vector<32x128xf32>
    %15 = arith.mulf %13, %14 : vector<32x128xf32>
    %16 = arith.addf %10, %15 : vector<32x128xf32>
    %c0_4 = arith.constant 0 : index
    %c0_5 = arith.constant 0 : index
    %c0_6 = arith.constant 0 : index
    %17 = vector.load %arg3[%c0_4, %c0_5, %c0_6] : memref<4x32x1xf32, #tpu.memory_space<vmem>>, vector<1x32x1xf32>
    %18 = vector.shape_cast %17 : vector<1x32x1xf32> to vector<32x1xf32>
    %19 = vector.broadcast %18 : vector<32x1xf32> to vector<32x128xf32>
    %20 = arith.addf %16, %19 : vector<32x128xf32>
    %cst_7 = arith.constant 0.000000e+00 : f32
    %21 = vector.broadcast %cst_7 : f32 to vector<32x128xf32>
    %22 = arith.maximumf %20, %21 : vector<32x128xf32>
    %c0_8 = arith.constant 0 : index
    %c0_9 = arith.constant 0 : index
    %c0_10 = arith.constant 0 : index
    %23 = vector.load %arg4[%c0_8, %c0_9, %c0_10] : memref<4x4x32xf32, #tpu.memory_space<vmem>>, vector<1x4x32xf32>
    %24 = vector.shape_cast %23 : vector<1x4x32xf32> to vector<4x32xf32>
    %cst_11 = arith.constant dense<0.000000e+00> : vector<4x128xf32>
    %25 = tpu.matmul %24, %22, %cst_11 {dimension_numbers = #tpu.dot_dimension_numbers<[1], [0], [0], [1], [0, 0, 1, 1], [], []>} : vector<4x32xf32>, vector<32x128xf32>, vector<4x128xf32> -> vector<4x128xf32>
    %c0_12 = arith.constant 0 : index
    %c0_13 = arith.constant 0 : index
    %c0_14 = arith.constant 0 : index
    %26 = vector.load %arg5[%c0_12, %c0_13, %c0_14] : memref<4x4x1xf32, #tpu.memory_space<vmem>>, vector<1x4x1xf32>
    %27 = vector.shape_cast %26 : vector<1x4x1xf32> to vector<4x1xf32>
    %28 = vector.broadcast %27 : vector<4x1xf32> to vector<4x128xf32>
    %29 = arith.addf %25, %28 : vector<4x128xf32>
    %30 = vector.extract_strided_slice %29 {offsets = [0, 0], sizes = [2, 128], strides = [1, 1]} : vector<4x128xf32> to vector<2x128xf32>
    %31 = math.tanh %30 : vector<2x128xf32>
    %32 = vector.extract_strided_slice %29 {offsets = [2, 0], sizes = [2, 128], strides = [1, 1]} : vector<4x128xf32> to vector<2x128xf32>
    %33 = math.exp %31 : vector<2x128xf32>
    %34 = arith.mulf %2, %33 : vector<2x128xf32>
    %35 = arith.addf %34, %32 : vector<2x128xf32>
    %36 = vector.extract_strided_slice %31 {offsets = [0, 0], sizes = [1, 128], strides = [1, 1]} : vector<2x128xf32> to vector<1x128xf32>
    %37 = arith.addf %3, %36 : vector<1x128xf32>
    %38 = vector.extract_strided_slice %31 {offsets = [1, 0], sizes = [1, 128], strides = [1, 1]} : vector<2x128xf32> to vector<1x128xf32>
    %39 = arith.addf %37, %38 : vector<1x128xf32>
    %c1 = arith.constant 1 : index
    %c0_15 = arith.constant 0 : index
    %c0_16 = arith.constant 0 : index
    %40 = vector.load %arg2[%c1, %c0_15, %c0_16] : memref<4x32x2xf32, #tpu.memory_space<vmem>>, vector<1x32x2xf32>
    %41 = vector.shape_cast %40 : vector<1x32x2xf32> to vector<32x2xf32>
    %42 = vector.extract_strided_slice %41 {offsets = [0, 0], sizes = [32, 1], strides = [1, 1]} : vector<32x2xf32> to vector<32x1xf32>
    %43 = vector.extract_strided_slice %35 {offsets = [0, 0], sizes = [1, 128], strides = [1, 1]} : vector<2x128xf32> to vector<1x128xf32>
    %44 = vector.broadcast %42 : vector<32x1xf32> to vector<32x128xf32>
    %45 = vector.broadcast %43 : vector<1x128xf32> to vector<32x128xf32>
    %46 = arith.mulf %44, %45 : vector<32x128xf32>
    %47 = vector.extract_strided_slice %41 {offsets = [0, 1], sizes = [32, 1], strides = [1, 1]} : vector<32x2xf32> to vector<32x1xf32>
    %48 = vector.extract_strided_slice %35 {offsets = [1, 0], sizes = [1, 128], strides = [1, 1]} : vector<2x128xf32> to vector<1x128xf32>
    %49 = vector.broadcast %47 : vector<32x1xf32> to vector<32x128xf32>
    %50 = vector.broadcast %48 : vector<1x128xf32> to vector<32x128xf32>
    %51 = arith.mulf %49, %50 : vector<32x128xf32>
    %52 = arith.addf %46, %51 : vector<32x128xf32>
    %c1_17 = arith.constant 1 : index
    %c0_18 = arith.constant 0 : index
    %c0_19 = arith.constant 0 : index
    %53 = vector.load %arg3[%c1_17, %c0_18, %c0_19] : memref<4x32x1xf32, #tpu.memory_space<vmem>>, vector<1x32x1xf32>
    %54 = vector.shape_cast %53 : vector<1x32x1xf32> to vector<32x1xf32>
    %55 = vector.broadcast %54 : vector<32x1xf32> to vector<32x128xf32>
    %56 = arith.addf %52, %55 : vector<32x128xf32>
    %cst_20 = arith.constant 0.000000e+00 : f32
    %57 = vector.broadcast %cst_20 : f32 to vector<32x128xf32>
    %58 = arith.maximumf %56, %57 : vector<32x128xf32>
    %c1_21 = arith.constant 1 : index
    %c0_22 = arith.constant 0 : index
    %c0_23 = arith.constant 0 : index
    %59 = vector.load %arg4[%c1_21, %c0_22, %c0_23] : memref<4x4x32xf32, #tpu.memory_space<vmem>>, vector<1x4x32xf32>
    %60 = vector.shape_cast %59 : vector<1x4x32xf32> to vector<4x32xf32>
    %cst_24 = arith.constant dense<0.000000e+00> : vector<4x128xf32>
    %61 = tpu.matmul %60, %58, %cst_24 {dimension_numbers = #tpu.dot_dimension_numbers<[1], [0], [0], [1], [0, 0, 1, 1], [], []>} : vector<4x32xf32>, vector<32x128xf32>, vector<4x128xf32> -> vector<4x128xf32>
    %c1_25 = arith.constant 1 : index
    %c0_26 = arith.constant 0 : index
    %c0_27 = arith.constant 0 : index
    %62 = vector.load %arg5[%c1_25, %c0_26, %c0_27] : memref<4x4x1xf32, #tpu.memory_space<vmem>>, vector<1x4x1xf32>
    %63 = vector.shape_cast %62 : vector<1x4x1xf32> to vector<4x1xf32>
    %64 = vector.broadcast %63 : vector<4x1xf32> to vector<4x128xf32>
    %65 = arith.addf %61, %64 : vector<4x128xf32>
    %66 = vector.extract_strided_slice %65 {offsets = [0, 0], sizes = [2, 128], strides = [1, 1]} : vector<4x128xf32> to vector<2x128xf32>
    %67 = math.tanh %66 : vector<2x128xf32>
    %68 = vector.extract_strided_slice %65 {offsets = [2, 0], sizes = [2, 128], strides = [1, 1]} : vector<4x128xf32> to vector<2x128xf32>
    %69 = math.exp %67 : vector<2x128xf32>
    %70 = arith.mulf %1, %69 : vector<2x128xf32>
    %71 = arith.addf %70, %68 : vector<2x128xf32>
    %72 = vector.extract_strided_slice %67 {offsets = [0, 0], sizes = [1, 128], strides = [1, 1]} : vector<2x128xf32> to vector<1x128xf32>
    %73 = arith.addf %39, %72 : vector<1x128xf32>
    %74 = vector.extract_strided_slice %67 {offsets = [1, 0], sizes = [1, 128], strides = [1, 1]} : vector<2x128xf32> to vector<1x128xf32>
    %75 = arith.addf %73, %74 : vector<1x128xf32>
    %c2 = arith.constant 2 : index
    %c0_28 = arith.constant 0 : index
    %c0_29 = arith.constant 0 : index
    %76 = vector.load %arg2[%c2, %c0_28, %c0_29] : memref<4x32x2xf32, #tpu.memory_space<vmem>>, vector<1x32x2xf32>
    %77 = vector.shape_cast %76 : vector<1x32x2xf32> to vector<32x2xf32>
    %78 = vector.extract_strided_slice %77 {offsets = [0, 0], sizes = [32, 1], strides = [1, 1]} : vector<32x2xf32> to vector<32x1xf32>
    %79 = vector.extract_strided_slice %71 {offsets = [0, 0], sizes = [1, 128], strides = [1, 1]} : vector<2x128xf32> to vector<1x128xf32>
    %80 = vector.broadcast %78 : vector<32x1xf32> to vector<32x128xf32>
    %81 = vector.broadcast %79 : vector<1x128xf32> to vector<32x128xf32>
    %82 = arith.mulf %80, %81 : vector<32x128xf32>
    %83 = vector.extract_strided_slice %77 {offsets = [0, 1], sizes = [32, 1], strides = [1, 1]} : vector<32x2xf32> to vector<32x1xf32>
    %84 = vector.extract_strided_slice %71 {offsets = [1, 0], sizes = [1, 128], strides = [1, 1]} : vector<2x128xf32> to vector<1x128xf32>
    %85 = vector.broadcast %83 : vector<32x1xf32> to vector<32x128xf32>
    %86 = vector.broadcast %84 : vector<1x128xf32> to vector<32x128xf32>
    %87 = arith.mulf %85, %86 : vector<32x128xf32>
    %88 = arith.addf %82, %87 : vector<32x128xf32>
    %c2_30 = arith.constant 2 : index
    %c0_31 = arith.constant 0 : index
    %c0_32 = arith.constant 0 : index
    %89 = vector.load %arg3[%c2_30, %c0_31, %c0_32] : memref<4x32x1xf32, #tpu.memory_space<vmem>>, vector<1x32x1xf32>
    %90 = vector.shape_cast %89 : vector<1x32x1xf32> to vector<32x1xf32>
    %91 = vector.broadcast %90 : vector<32x1xf32> to vector<32x128xf32>
    %92 = arith.addf %88, %91 : vector<32x128xf32>
    %cst_33 = arith.constant 0.000000e+00 : f32
    %93 = vector.broadcast %cst_33 : f32 to vector<32x128xf32>
    %94 = arith.maximumf %92, %93 : vector<32x128xf32>
    %c2_34 = arith.constant 2 : index
    %c0_35 = arith.constant 0 : index
    %c0_36 = arith.constant 0 : index
    %95 = vector.load %arg4[%c2_34, %c0_35, %c0_36] : memref<4x4x32xf32, #tpu.memory_space<vmem>>, vector<1x4x32xf32>
    %96 = vector.shape_cast %95 : vector<1x4x32xf32> to vector<4x32xf32>
    %cst_37 = arith.constant dense<0.000000e+00> : vector<4x128xf32>
    %97 = tpu.matmul %96, %94, %cst_37 {dimension_numbers = #tpu.dot_dimension_numbers<[1], [0], [0], [1], [0, 0, 1, 1], [], []>} : vector<4x32xf32>, vector<32x128xf32>, vector<4x128xf32> -> vector<4x128xf32>
    %c2_38 = arith.constant 2 : index
    %c0_39 = arith.constant 0 : index
    %c0_40 = arith.constant 0 : index
    %98 = vector.load %arg5[%c2_38, %c0_39, %c0_40] : memref<4x4x1xf32, #tpu.memory_space<vmem>>, vector<1x4x1xf32>
    %99 = vector.shape_cast %98 : vector<1x4x1xf32> to vector<4x1xf32>
    %100 = vector.broadcast %99 : vector<4x1xf32> to vector<4x128xf32>
    %101 = arith.addf %97, %100 : vector<4x128xf32>
    %102 = vector.extract_strided_slice %101 {offsets = [0, 0], sizes = [2, 128], strides = [1, 1]} : vector<4x128xf32> to vector<2x128xf32>
    %103 = math.tanh %102 : vector<2x128xf32>
    %104 = vector.extract_strided_slice %101 {offsets = [2, 0], sizes = [2, 128], strides = [1, 1]} : vector<4x128xf32> to vector<2x128xf32>
    %105 = math.exp %103 : vector<2x128xf32>
    %106 = arith.mulf %35, %105 : vector<2x128xf32>
    %107 = arith.addf %106, %104 : vector<2x128xf32>
    %108 = vector.extract_strided_slice %103 {offsets = [0, 0], sizes = [1, 128], strides = [1, 1]} : vector<2x128xf32> to vector<1x128xf32>
    %109 = arith.addf %75, %108 : vector<1x128xf32>
    %110 = vector.extract_strided_slice %103 {offsets = [1, 0], sizes = [1, 128], strides = [1, 1]} : vector<2x128xf32> to vector<1x128xf32>
    %111 = arith.addf %109, %110 : vector<1x128xf32>
    %c3 = arith.constant 3 : index
    %c0_41 = arith.constant 0 : index
    %c0_42 = arith.constant 0 : index
    %112 = vector.load %arg2[%c3, %c0_41, %c0_42] : memref<4x32x2xf32, #tpu.memory_space<vmem>>, vector<1x32x2xf32>
    %113 = vector.shape_cast %112 : vector<1x32x2xf32> to vector<32x2xf32>
    %114 = vector.extract_strided_slice %113 {offsets = [0, 0], sizes = [32, 1], strides = [1, 1]} : vector<32x2xf32> to vector<32x1xf32>
    %115 = vector.extract_strided_slice %107 {offsets = [0, 0], sizes = [1, 128], strides = [1, 1]} : vector<2x128xf32> to vector<1x128xf32>
    %116 = vector.broadcast %114 : vector<32x1xf32> to vector<32x128xf32>
    %117 = vector.broadcast %115 : vector<1x128xf32> to vector<32x128xf32>
    %118 = arith.mulf %116, %117 : vector<32x128xf32>
    %119 = vector.extract_strided_slice %113 {offsets = [0, 1], sizes = [32, 1], strides = [1, 1]} : vector<32x2xf32> to vector<32x1xf32>
    %120 = vector.extract_strided_slice %107 {offsets = [1, 0], sizes = [1, 128], strides = [1, 1]} : vector<2x128xf32> to vector<1x128xf32>
    %121 = vector.broadcast %119 : vector<32x1xf32> to vector<32x128xf32>
    %122 = vector.broadcast %120 : vector<1x128xf32> to vector<32x128xf32>
    %123 = arith.mulf %121, %122 : vector<32x128xf32>
    %124 = arith.addf %118, %123 : vector<32x128xf32>
    %c3_43 = arith.constant 3 : index
    %c0_44 = arith.constant 0 : index
    %c0_45 = arith.constant 0 : index
    %125 = vector.load %arg3[%c3_43, %c0_44, %c0_45] : memref<4x32x1xf32, #tpu.memory_space<vmem>>, vector<1x32x1xf32>
    %126 = vector.shape_cast %125 : vector<1x32x1xf32> to vector<32x1xf32>
    %127 = vector.broadcast %126 : vector<32x1xf32> to vector<32x128xf32>
    %128 = arith.addf %124, %127 : vector<32x128xf32>
    %cst_46 = arith.constant 0.000000e+00 : f32
    %129 = vector.broadcast %cst_46 : f32 to vector<32x128xf32>
    %130 = arith.maximumf %128, %129 : vector<32x128xf32>
    %c3_47 = arith.constant 3 : index
    %c0_48 = arith.constant 0 : index
    %c0_49 = arith.constant 0 : index
    %131 = vector.load %arg4[%c3_47, %c0_48, %c0_49] : memref<4x4x32xf32, #tpu.memory_space<vmem>>, vector<1x4x32xf32>
    %132 = vector.shape_cast %131 : vector<1x4x32xf32> to vector<4x32xf32>
    %cst_50 = arith.constant dense<0.000000e+00> : vector<4x128xf32>
    %133 = tpu.matmul %132, %130, %cst_50 {dimension_numbers = #tpu.dot_dimension_numbers<[1], [0], [0], [1], [0, 0, 1, 1], [], []>} : vector<4x32xf32>, vector<32x128xf32>, vector<4x128xf32> -> vector<4x128xf32>
    %c3_51 = arith.constant 3 : index
    %c0_52 = arith.constant 0 : index
    %c0_53 = arith.constant 0 : index
    %134 = vector.load %arg5[%c3_51, %c0_52, %c0_53] : memref<4x4x1xf32, #tpu.memory_space<vmem>>, vector<1x4x1xf32>
    %135 = vector.shape_cast %134 : vector<1x4x1xf32> to vector<4x1xf32>
    %136 = vector.broadcast %135 : vector<4x1xf32> to vector<4x128xf32>
    %137 = arith.addf %133, %136 : vector<4x128xf32>
    %138 = vector.extract_strided_slice %137 {offsets = [0, 0], sizes = [2, 128], strides = [1, 1]} : vector<4x128xf32> to vector<2x128xf32>
    %139 = math.tanh %138 : vector<2x128xf32>
    %140 = vector.extract_strided_slice %137 {offsets = [2, 0], sizes = [2, 128], strides = [1, 1]} : vector<4x128xf32> to vector<2x128xf32>
    %141 = math.exp %139 : vector<2x128xf32>
    %142 = arith.mulf %71, %141 : vector<2x128xf32>
    %143 = arith.addf %142, %140 : vector<2x128xf32>
    %144 = vector.extract_strided_slice %139 {offsets = [0, 0], sizes = [1, 128], strides = [1, 1]} : vector<2x128xf32> to vector<1x128xf32>
    %145 = arith.addf %111, %144 : vector<1x128xf32>
    %146 = vector.extract_strided_slice %139 {offsets = [1, 0], sizes = [1, 128], strides = [1, 1]} : vector<2x128xf32> to vector<1x128xf32>
    %147 = arith.addf %145, %146 : vector<1x128xf32>
    %cst_54 = arith.constant 0.000000e+00 : f32
    %148 = vector.broadcast %cst_54 : f32 to vector<3x128xf32>
    %149 = tpu.concatenate %143, %107, %147, %148 in 0 : vector<2x128xf32>, vector<2x128xf32>, vector<1x128xf32>, vector<3x128xf32> -> vector<8x128xf32>
    %c0_55 = arith.constant 0 : index
    %c0_56 = arith.constant 0 : index
    %150 = vector.load %arg6[%c0_55, %c0_56] : memref<8x128xf32, #tpu.memory_space<vmem>>, vector<8x128xf32>
    tpu.vector_store %arg6[%c0_55, %c0_56], %149 {strides = array<i32>} : memref<8x128xf32, #tpu.memory_space<vmem>>, vector<8x128xf32>,
    return
  }
  func.func @transform_0(%arg0: i32) -> (i32, i32) {
    %c0_i32 = arith.constant 0 : i32
    %c0_i32_0 = arith.constant 0 : i32
    return %c0_i32, %arg0 : i32, i32
  }
  func.func @transform_1(%arg0: i32) -> (i32, i32, i32) {
    %c0_i32 = arith.constant 0 : i32
    %c0_i32_0 = arith.constant 0 : i32
    %c0_i32_1 = arith.constant 0 : i32
    %c0_i32_2 = arith.constant 0 : i32
    return %c0_i32, %c0_i32_0, %c0_i32_1 : i32, i32, i32
  }
  func.func @transform_2(%arg0: i32) -> (i32, i32, i32) {
    %c0_i32 = arith.constant 0 : i32
    %c0_i32_0 = arith.constant 0 : i32
    %c0_i32_1 = arith.constant 0 : i32
    %c0_i32_2 = arith.constant 0 : i32
    return %c0_i32, %c0_i32_0, %c0_i32_1 : i32, i32, i32
  }
  func.func @transform_3(%arg0: i32) -> (i32, i32, i32) {
    %c0_i32 = arith.constant 0 : i32
    %c0_i32_0 = arith.constant 0 : i32
    %c0_i32_1 = arith.constant 0 : i32
    %c0_i32_2 = arith.constant 0 : i32
    return %c0_i32, %c0_i32_0, %c0_i32_1 : i32, i32, i32
  }
  func.func @transform_4(%arg0: i32) -> (i32, i32, i32) {
    %c0_i32 = arith.constant 0 : i32
    %c0_i32_0 = arith.constant 0 : i32
    %c0_i32_1 = arith.constant 0 : i32
    %c0_i32_2 = arith.constant 0 : i32
    return %c0_i32, %c0_i32_0, %c0_i32_1 : i32, i32, i32
  }
  func.func @transform_5(%arg0: i32) -> (i32, i32) {
    %c0_i32 = arith.constant 0 : i32
    %c0_i32_0 = arith.constant 0 : i32
    return %c0_i32, %arg0 : i32, i32
  }
}

</mosaic_0001>

<llo_original>
// kernel: tpu_custom_call.1
$region0: #{tpu_custom_call.1}
  #allocation0 [shape = 'u32[]', space=smem, size = 0x4, offset = 0x4, fixed_abs, tag = 'smem constant byte address 0x4 - core index']
  #allocation1 [shape = 'u32[72,128]{1,0:T(1,128)}', space=vmem, size = 0x9000, scoped, tag = 'internal scratch']
  %s0 = inlined_call_operand.vmem [shape: f32[4,128], index: 0, kind: input, shape index: {}]
  %s1 = inlined_call_operand.vmem [shape: f32[4,32,2], index: 1, kind: input, shape index: {}]
  %s2 = inlined_call_operand.vmem [shape: f32[4,32,1], index: 2, kind: input, shape index: {}]
  %s3 = inlined_call_operand.vmem [shape: f32[4,4,32], index: 3, kind: input, shape index: {}]
  %s4 = inlined_call_operand.vmem [shape: f32[4,4,1], index: 4, kind: input, shape index: {}]
  %s5 = inlined_call_operand.hbm [shape: f32[8,128], index: 5, kind: output, shape index: {}]
  %s6 = sld [smem:[#allocation0]]
  $region30: #{tpu_custom_call.1} parent=0
    _
  %s8 = ssub.s32 1, %s6
  %s9 = scalar_select 0, %s8, %s6
  $region1: #{tpu_custom_call.1} parent=0
    #allocation2 [shape = 'u8[4096]{0}', space=vmem, size = 0x1000, scoped, tag = 'output window, operand 0, single buffered']
    #allocation3 [shape = 's32[1]{0}', space=sflag, size = 0x4, scoped, tag = 'scoped memory for tpu_custom_call.1']
    %10 = vsyncpa [#allocation3], 0
    // Predicated region
    $region2: #{tpu_custom_call.1} parent=1 // pred_check
      _
    $region3: #{tpu_custom_call.1} parent=1 // pred_check_branch
      %12 = sbr.rel (0) target = $region5
    $region4: #{tpu_custom_call.1} parent=1 // pred_region
      _
    $region5: #{tpu_custom_call.1} parent=1 // pred_fallthru
      _
    // Predicated region
    $region6: #{tpu_custom_call.1} parent=1 // pred_check
      _
    $region7: #{tpu_custom_call.1} parent=1 // pred_check_branch
      %14 = sbr.rel (0) target = $region9
    $region8: #{tpu_custom_call.1} parent=1 // pred_region
      _
    $region9: #{tpu_custom_call.1} parent=1 // pred_fallthru
      _
    // Predicated region
    $region10: #{tpu_custom_call.1} parent=1 // pred_check
      _
    $region11: #{tpu_custom_call.1} parent=1 // pred_check_branch
      %16 = sbr.rel (0) target = $region13
    $region12: #{tpu_custom_call.1} parent=1 // pred_region
      _
    $region13: #{tpu_custom_call.1} parent=1 // pred_fallthru
      _
    // Predicated region
    $region14: #{tpu_custom_call.1} parent=1 // pred_check
      _
    $region15: #{tpu_custom_call.1} parent=1 // pred_check_branch
      %18 = sbr.rel (0) target = $region17
    $region16: #{tpu_custom_call.1} parent=1 // pred_region
      _
    $region17: #{tpu_custom_call.1} parent=1 // pred_fallthru
      _
    // Predicated region
    $region18: #{tpu_custom_call.1} parent=1 // pred_check
      _
    $region19: #{tpu_custom_call.1} parent=1 // pred_check_branch
      %20 = sbr.rel (0) target = $region21
    $region20: #{tpu_custom_call.1} parent=1 // pred_region
      _
    $region21: #{tpu_custom_call.1} parent=1 // pred_fallthru
      _
    %v21 = vld [vmem:[%s0] sm:$0xf]
    %v22 = vld [vmem:[%s1] sm:$0xff]
    %v23 = vld [vmem:[%s1 + $0x8] sm:$0xff]
    %v24 = vld [vmem:[%s1 + $0x10] sm:$0xff]
    %v25 = vld [vmem:[%s1 + $0x18] sm:$0xff]
    %27 = vset.pattern.permute.xlu0 0
    %28 = vperm.xlu0 %27, %v22
    %v29 = vpop.permute.xlu0 %28
    %32 = vset.pattern.permute.xlu0 0
    %33 = vperm.xlu0 %32, %v23
    %v34 = vpop.permute.xlu0 %33
    %37 = vset.pattern.permute.xlu0 0
    %38 = vperm.xlu0 %37, %v24
    %v39 = vpop.permute.xlu0 %38
    %42 = vset.pattern.permute.xlu0 0
    %43 = vperm.xlu0 %42, %v25
    %v44 = vpop.permute.xlu0 %43
    %v46 = vperm.slane %v21, 0
    %v47 = vmul.f32 %v29, %v46
    %v48 = vmul.f32 %v34, %v46
    %v49 = vmul.f32 %v39, %v46
    %v50 = vmul.f32 %v44, %v46
    %51 = vset.pattern.permute.xlu0 1
    %52 = vperm.xlu0 %51, %v22
    %v53 = vpop.permute.xlu0 %52
    %55 = vset.pattern.permute.xlu0 1
    %56 = vperm.xlu0 %55, %v23
    %v57 = vpop.permute.xlu0 %56
    %59 = vset.pattern.permute.xlu0 1
    %60 = vperm.xlu0 %59, %v24
    %v61 = vpop.permute.xlu0 %60
    %63 = vset.pattern.permute.xlu0 1
    %64 = vperm.xlu0 %63, %v25
    %v65 = vpop.permute.xlu0 %64
    %v67 = vperm.slane %v21, 1
    %v68 = vmul.f32 %v53, %v67
    %v69 = vmul.f32 %v57, %v67
    %v70 = vmul.f32 %v61, %v67
    %v71 = vmul.f32 %v65, %v67
    %v72 = vadd.f32 %v47, %v68
    %v73 = vadd.f32 %v48, %v69
    %v74 = vadd.f32 %v49, %v70
    %v75 = vadd.f32 %v50, %v71
    %v76 = vld [vmem:[%s2] sm:$0xff]
    %v77 = vld [vmem:[%s2 + $0x8] sm:$0xff]
    %v78 = vld [vmem:[%s2 + $0x10] sm:$0xff]
    %v79 = vld [vmem:[%s2 + $0x18] sm:$0xff]
    %81 = vset.pattern.permute.xlu0 0
    %82 = vperm.xlu0 %81, %v76
    %v83 = vpop.permute.xlu0 %82
    %86 = vset.pattern.permute.xlu0 0
    %87 = vperm.xlu0 %86, %v77
    %v88 = vpop.permute.xlu0 %87
    %91 = vset.pattern.permute.xlu0 0
    %92 = vperm.xlu0 %91, %v78
    %v93 = vpop.permute.xlu0 %92
    %96 = vset.pattern.permute.xlu0 0
    %97 = vperm.xlu0 %96, %v79
    %v98 = vpop.permute.xlu0 %97
    %v100 = vadd.f32 %v72, %v83
    %v101 = vadd.f32 %v73, %v88
    %v102 = vadd.f32 %v74, %v93
    %v103 = vadd.f32 %v75, %v98
    %v104 = vmax.f32 %v100, 0.0
    %v105 = vmax.f32 %v101, 0.0
    %v106 = vmax.f32 %v102, 0.0
    %v107 = vmax.f32 %v103, 0.0
    %v108 = vld [vmem:[%s3] sm:$0xf]
    %v109 = vld [vmem:[%s4] sm:$0xf]
    %111 = vset.pattern.permute.xlu0 0
    %112 = vperm.xlu0 %111, %v109
    %v113 = vpop.permute.xlu0 %112
    %vm115 = vcmask 261120
    %v117 = vsel %vm115, %v108, 0
    %119 = vmatpush.msra.mxu0 0.0
    %120 = vmatpush.msra.mxu0 0.0
    %121 = vmatpush.msra.mxu0 0.0
    %122 = vmatpush.msra.mxu0 0.0
    %123 = vmatpush.msra.mxu0 0.0
    %124 = vmatpush.msra.mxu0 0.0
    %125 = vmatpush.msra.mxu0 0.0
    %126 = vmatpush.msra.mxu0 0.0
    %127 = vmatpush.msra.mxu0 0.0
    %128 = vmatpush.msra.mxu0 0.0
    %129 = vmatpush.msra.mxu0 0.0
    %130 = vmatpush.msra.mxu0 0.0
    %131 = vmatpush.msra.mxu0 %v107
    %132 = vmatpush.msra.mxu0 %v106
    %133 = vmatpush.msra.mxu0 %v105
    %134 = vmatpush.msra.mxu0 %v104
    %135 = vmatmul.f32.gmra.mxu0 %v117
    %v136 = vpop.f32.mrf.mxu0
    %v137 = vadd.f32 %v113, %v136
    %138 = vdwg.mxu0
    %v139 = vtanh.pop %v137
    %v140 = vmul.f32 %v139, 1.442695
    %v141 = vpow.pop %v140
    %v143 = vrot.slane %v141, 6
    %v145 = vmul.f32 %v21, %v143
    %v146 = vadd.f32 %v145, %v137
    %v147 = vadd.f32 %v139, 0.0
    %v149 = vrot.slane %v139, 1
    %v151 = vadd.f32 %v147, %v149
    %s152 = scalar_lea.vmem %s1, 32
    %v153 = vld [vmem:[%s152] sm:$0xff]
    %v154 = vld [vmem:[%s152 + $0x8] sm:$0xff]
    %v155 = vld [vmem:[%s152 + $0x10] sm:$0xff]
    %v156 = vld [vmem:[%s152 + $0x18] sm:$0xff]
    %158 = vset.pattern.permute.xlu0 0
    %159 = vperm.xlu0 %158, %v153
    %v160 = vpop.permute.xlu0 %159
    %163 = vset.pattern.permute.xlu0 0
    %164 = vperm.xlu0 %163, %v154
    %v165 = vpop.permute.xlu0 %164
    %168 = vset.pattern.permute.xlu0 0
    %169 = vperm.xlu0 %168, %v155
    %v170 = vpop.permute.xlu0 %169
    %173 = vset.pattern.permute.xlu0 0
    %174 = vperm.xlu0 %173, %v156
    %v175 = vpop.permute.xlu0 %174
    %v177 = vperm.slane %v146, 2
    %v178 = vmul.f32 %v160, %v177
    %v179 = vmul.f32 %v165, %v177
    %v180 = vmul.f32 %v170, %v177
    %v181 = vmul.f32 %v175, %v177
    %182 = vset.pattern.permute.xlu0 1
    %183 = vperm.xlu0 %182, %v153
    %v184 = vpop.permute.xlu0 %183
    %186 = vset.pattern.permute.xlu0 1
    %187 = vperm.xlu0 %186, %v154
    %v188 = vpop.permute.xlu0 %187
    %190 = vset.pattern.permute.xlu0 1
    %191 = vperm.xlu0 %190, %v155
    %v192 = vpop.permute.xlu0 %191
    %194 = vset.pattern.permute.xlu0 1
    %195 = vperm.xlu0 %194, %v156
    %v196 = vpop.permute.xlu0 %195
    %v198 = vperm.slane %v146, 3
    %v199 = vmul.f32 %v184, %v198
    %v200 = vmul.f32 %v188, %v198
    %v201 = vmul.f32 %v192, %v198
    %v202 = vmul.f32 %v196, %v198
    %v203 = vadd.f32 %v178, %v199
    %v204 = vadd.f32 %v179, %v200
    %v205 = vadd.f32 %v180, %v201
    %v206 = vadd.f32 %v181, %v202
    %s207 = scalar_lea.vmem %s2, 32
    %v208 = vld [vmem:[%s207] sm:$0xff]
    %v209 = vld [vmem:[%s207 + $0x8] sm:$0xff]
    %v210 = vld [vmem:[%s207 + $0x10] sm:$0xff]
    %v211 = vld [vmem:[%s207 + $0x18] sm:$0xff]
    %213 = vset.pattern.permute.xlu0 0
    %214 = vperm.xlu0 %213, %v208
    %v215 = vpop.permute.xlu0 %214
    %218 = vset.pattern.permute.xlu0 0
    %219 = vperm.xlu0 %218, %v209
    %v220 = vpop.permute.xlu0 %219
    %223 = vset.pattern.permute.xlu0 0
    %224 = vperm.xlu0 %223, %v210
    %v225 = vpop.permute.xlu0 %224
    %228 = vset.pattern.permute.xlu0 0
    %229 = vperm.xlu0 %228, %v211
    %v230 = vpop.permute.xlu0 %229
    %v232 = vadd.f32 %v203, %v215
    %v233 = vadd.f32 %v204, %v220
    %v234 = vadd.f32 %v205, %v225
    %v235 = vadd.f32 %v206, %v230
    %v236 = vmax.f32 %v232, 0.0
    %v237 = vmax.f32 %v233, 0.0
    %v238 = vmax.f32 %v234, 0.0
    %v239 = vmax.f32 %v235, 0.0
    %s240 = scalar_lea.vmem %s3, 4
    %v241 = vld [vmem:[%s240] sm:$0xf]
    %s242 = scalar_lea.vmem %s4, 4
    %v243 = vld [vmem:[%s242] sm:$0xf]
    %245 = vset.pattern.permute.xlu0 0
    %246 = vperm.xlu0 %245, %v243
    %v247 = vpop.permute.xlu0 %246
    %v250 = vsel %vm115, %v241, 0
    %252 = vmatpush.msra.mxu0 0.0
    %253 = vmatpush.msra.mxu0 0.0
    %254 = vmatpush.msra.mxu0 0.0
    %255 = vmatpush.msra.mxu0 0.0
    %256 = vmatpush.msra.mxu0 0.0
    %257 = vmatpush.msra.mxu0 0.0
    %258 = vmatpush.msra.mxu0 0.0
    %259 = vmatpush.msra.mxu0 0.0
    %260 = vmatpush.msra.mxu0 0.0
    %261 = vmatpush.msra.mxu0 0.0
    %262 = vmatpush.msra.mxu0 0.0
    %263 = vmatpush.msra.mxu0 0.0
    %264 = vmatpush.msra.mxu0 %v239
    %265 = vmatpush.msra.mxu0 %v238
    %266 = vmatpush.msra.mxu0 %v237
    %267 = vmatpush.msra.mxu0 %v236
    %268 = vmatmul.f32.gmra.mxu0 %v250
    %v269 = vpop.f32.mrf.mxu0
    %v270 = vadd.f32 %v247, %v269
    %271 = vdwg.mxu0
    %v272 = vtanh.pop %v270
    %v273 = vmul.f32 %v272, 1.442695
    %v274 = vpow.pop %v273
    %v275 = vmul.f32 %v21, %v274
    %v277 = vrot.slane %v270, 2
    %v279 = vadd.f32 %v275, %v277
    %v280 = vadd.f32 %v151, %v272
    %v282 = vrot.slane %v272, 1
    %v284 = vadd.f32 %v280, %v282
    %s285 = scalar_lea.vmem %s1, 64
    %v286 = vld [vmem:[%s285] sm:$0xff]
    %v287 = vld [vmem:[%s285 + $0x8] sm:$0xff]
    %v288 = vld [vmem:[%s285 + $0x10] sm:$0xff]
    %v289 = vld [vmem:[%s285 + $0x18] sm:$0xff]
    %291 = vset.pattern.permute.xlu0 0
    %292 = vperm.xlu0 %291, %v286
    %v293 = vpop.permute.xlu0 %292
    %296 = vset.pattern.permute.xlu0 0
    %297 = vperm.xlu0 %296, %v287
    %v298 = vpop.permute.xlu0 %297
    %301 = vset.pattern.permute.xlu0 0
    %302 = vperm.xlu0 %301, %v288
    %v303 = vpop.permute.xlu0 %302
    %306 = vset.pattern.permute.xlu0 0
    %307 = vperm.xlu0 %306, %v289
    %v308 = vpop.permute.xlu0 %307
    %v310 = vperm.slane %v279, 0
    %v311 = vmul.f32 %v293, %v310
    %v312 = vmul.f32 %v298, %v310
    %v313 = vmul.f32 %v303, %v310
    %v314 = vmul.f32 %v308, %v310
    %315 = vset.pattern.permute.xlu0 1
    %316 = vperm.xlu0 %315, %v286
    %v317 = vpop.permute.xlu0 %316
    %319 = vset.pattern.permute.xlu0 1
    %320 = vperm.xlu0 %319, %v287
    %v321 = vpop.permute.xlu0 %320
    %323 = vset.pattern.permute.xlu0 1
    %324 = vperm.xlu0 %323, %v288
    %v325 = vpop.permute.xlu0 %324
    %327 = vset.pattern.permute.xlu0 1
    %328 = vperm.xlu0 %327, %v289
    %v329 = vpop.permute.xlu0 %328
    %v331 = vperm.slane %v279, 1
    %v332 = vmul.f32 %v317, %v331
    %v333 = vmul.f32 %v321, %v331
    %v334 = vmul.f32 %v325, %v331
    %v335 = vmul.f32 %v329, %v331
    %v336 = vadd.f32 %v311, %v332
    %v337 = vadd.f32 %v312, %v333
    %v338 = vadd.f32 %v313, %v334
    %v339 = vadd.f32 %v314, %v335
    %s340 = scalar_lea.vmem %s2, 64
    %v341 = vld [vmem:[%s340] sm:$0xff]
    %v342 = vld [vmem:[%s340 + $0x8] sm:$0xff]
    %v343 = vld [vmem:[%s340 + $0x10] sm:$0xff]
    %v344 = vld [vmem:[%s340 + $0x18] sm:$0xff]
    %346 = vset.pattern.permute.xlu0 0
    %347 = vperm.xlu0 %346, %v341
    %v348 = vpop.permute.xlu0 %347
    %351 = vset.pattern.permute.xlu0 0
    %352 = vperm.xlu0 %351, %v342
    %v353 = vpop.permute.xlu0 %352
    %356 = vset.pattern.permute.xlu0 0
    %357 = vperm.xlu0 %356, %v343
    %v358 = vpop.permute.xlu0 %357
    %361 = vset.pattern.permute.xlu0 0
    %362 = vperm.xlu0 %361, %v344
    %v363 = vpop.permute.xlu0 %362
    %v365 = vadd.f32 %v336, %v348
    %v366 = vadd.f32 %v337, %v353
    %v367 = vadd.f32 %v338, %v358
    %v368 = vadd.f32 %v339, %v363
    %v369 = vmax.f32 %v365, 0.0
    %v370 = vmax.f32 %v366, 0.0
    %v371 = vmax.f32 %v367, 0.0
    %v372 = vmax.f32 %v368, 0.0
    %s373 = scalar_lea.vmem %s3, 8
    %v374 = vld [vmem:[%s373] sm:$0xf]
    %s375 = scalar_lea.vmem %s4, 8
    %v376 = vld [vmem:[%s375] sm:$0xf]
    %378 = vset.pattern.permute.xlu0 0
    %379 = vperm.xlu0 %378, %v376
    %v380 = vpop.permute.xlu0 %379
    %v383 = vsel %vm115, %v374, 0
    %385 = vmatpush.msra.mxu0 0.0
    %386 = vmatpush.msra.mxu0 0.0
    %387 = vmatpush.msra.mxu0 0.0
    %388 = vmatpush.msra.mxu0 0.0
    %389 = vmatpush.msra.mxu0 0.0
    %390 = vmatpush.msra.mxu0 0.0
    %391 = vmatpush.msra.mxu0 0.0
    %392 = vmatpush.msra.mxu0 0.0
    %393 = vmatpush.msra.mxu0 0.0
    %394 = vmatpush.msra.mxu0 0.0
    %395 = vmatpush.msra.mxu0 0.0
    %396 = vmatpush.msra.mxu0 0.0
    %397 = vmatpush.msra.mxu0 %v372
    %398 = vmatpush.msra.mxu0 %v371
    %399 = vmatpush.msra.mxu0 %v370
    %400 = vmatpush.msra.mxu0 %v369
    %401 = vmatmul.f32.gmra.mxu0 %v383
    %v402 = vpop.f32.mrf.mxu0
    %v403 = vadd.f32 %v380, %v402
    %404 = vdwg.mxu0
    %v405 = vtanh.pop %v403
    %v406 = vmul.f32 %v405, 1.442695
    %v407 = vpow.pop %v406
    %v409 = vrot.slane %v407, 6
    %v411 = vmul.f32 %v146, %v409
    %v412 = vadd.f32 %v411, %v403
    %v413 = vadd.f32 %v284, %v405
    %v415 = vrot.slane %v405, 1
    %v417 = vadd.f32 %v413, %v415
    %s418 = scalar_lea.vmem %s1, 96
    %v419 = vld [vmem:[%s418] sm:$0xff]
    %v420 = vld [vmem:[%s418 + $0x8] sm:$0xff]
    %v421 = vld [vmem:[%s418 + $0x10] sm:$0xff]
    %v422 = vld [vmem:[%s418 + $0x18] sm:$0xff]
    %424 = vset.pattern.permute.xlu0 0
    %425 = vperm.xlu0 %424, %v419
    %v426 = vpop.permute.xlu0 %425
    %429 = vset.pattern.permute.xlu0 0
    %430 = vperm.xlu0 %429, %v420
    %v431 = vpop.permute.xlu0 %430
    %434 = vset.pattern.permute.xlu0 0
    %435 = vperm.xlu0 %434, %v421
    %v436 = vpop.permute.xlu0 %435
    %439 = vset.pattern.permute.xlu0 0
    %440 = vperm.xlu0 %439, %v422
    %v441 = vpop.permute.xlu0 %440
    %v443 = vperm.slane %v412, 2
    %v444 = vmul.f32 %v426, %v443
    %v445 = vmul.f32 %v431, %v443
    %v446 = vmul.f32 %v436, %v443
    %v447 = vmul.f32 %v441, %v443
    %448 = vset.pattern.permute.xlu0 1
    %449 = vperm.xlu0 %448, %v419
    %v450 = vpop.permute.xlu0 %449
    %452 = vset.pattern.permute.xlu0 1
    %453 = vperm.xlu0 %452, %v420
    %v454 = vpop.permute.xlu0 %453
    %456 = vset.pattern.permute.xlu0 1
    %457 = vperm.xlu0 %456, %v421
    %v458 = vpop.permute.xlu0 %457
    %460 = vset.pattern.permute.xlu0 1
    %461 = vperm.xlu0 %460, %v422
    %v462 = vpop.permute.xlu0 %461
    %v464 = vperm.slane %v412, 3
    %v465 = vmul.f32 %v450, %v464
    %v466 = vmul.f32 %v454, %v464
    %v467 = vmul.f32 %v458, %v464
    %v468 = vmul.f32 %v462, %v464
    %v469 = vadd.f32 %v444, %v465
    %v470 = vadd.f32 %v445, %v466
    %v471 = vadd.f32 %v446, %v467
    %v472 = vadd.f32 %v447, %v468
    %s473 = scalar_lea.vmem %s2, 96
    %v474 = vld [vmem:[%s473] sm:$0xff]
    %v475 = vld [vmem:[%s473 + $0x8] sm:$0xff]
    %v476 = vld [vmem:[%s473 + $0x10] sm:$0xff]
    %v477 = vld [vmem:[%s473 + $0x18] sm:$0xff]
    %479 = vset.pattern.permute.xlu0 0
    %480 = vperm.xlu0 %479, %v474
    %v481 = vpop.permute.xlu0 %480
    %484 = vset.pattern.permute.xlu0 0
    %485 = vperm.xlu0 %484, %v475
    %v486 = vpop.permute.xlu0 %485
    %489 = vset.pattern.permute.xlu0 0
    %490 = vperm.xlu0 %489, %v476
    %v491 = vpop.permute.xlu0 %490
    %494 = vset.pattern.permute.xlu0 0
    %495 = vperm.xlu0 %494, %v477
    %v496 = vpop.permute.xlu0 %495
    %v498 = vadd.f32 %v469, %v481
    %v499 = vadd.f32 %v470, %v486
    %v500 = vadd.f32 %v471, %v491
    %v501 = vadd.f32 %v472, %v496
    %v502 = vmax.f32 %v498, 0.0
    %v503 = vmax.f32 %v499, 0.0
    %v504 = vmax.f32 %v500, 0.0
    %v505 = vmax.f32 %v501, 0.0
    %s506 = scalar_lea.vmem %s3, 12
    %v507 = vld [vmem:[%s506] sm:$0xf]
    %s508 = scalar_lea.vmem %s4, 12
    %v509 = vld [vmem:[%s508] sm:$0xf]
    %511 = vset.pattern.permute.xlu0 0
    %512 = vperm.xlu0 %511, %v509
    %v513 = vpop.permute.xlu0 %512
    %v516 = vsel %vm115, %v507, 0
    %518 = vmatpush.msra.mxu0 0.0
    %519 = vmatpush.msra.mxu0 0.0
    %520 = vmatpush.msra.mxu0 0.0
    %521 = vmatpush.msra.mxu0 0.0
    %522 = vmatpush.msra.mxu0 0.0
    %523 = vmatpush.msra.mxu0 0.0
    %524 = vmatpush.msra.mxu0 0.0
    %525 = vmatpush.msra.mxu0 0.0
    %526 = vmatpush.msra.mxu0 0.0
    %527 = vmatpush.msra.mxu0 0.0
    %528 = vmatpush.msra.mxu0 0.0
    %529 = vmatpush.msra.mxu0 0.0
    %530 = vmatpush.msra.mxu0 %v505
    %531 = vmatpush.msra.mxu0 %v504
    %532 = vmatpush.msra.mxu0 %v503
    %533 = vmatpush.msra.mxu0 %v502
    %534 = vmatmul.f32.gmra.mxu0 %v516
    %v535 = vpop.f32.mrf.mxu0
    %v536 = vadd.f32 %v513, %v535
    %537 = vdwg.mxu0
    %v538 = vtanh.pop %v536
    %v539 = vmul.f32 %v538, 1.442695
    %v540 = vpow.pop %v539
    %v541 = vmul.f32 %v279, %v540
    %v543 = vrot.slane %v536, 2
    %v545 = vadd.f32 %v541, %v543
    %v546 = vadd.f32 %v417, %v538
    %v548 = vrot.slane %v538, 1
    %v550 = vadd.f32 %v546, %v548
    %v552 = vrot.slane %v550, 4
    %vm554 = vcmask 1041408
    %v555 = vsel %vm554, %v545, %v412
    %vm556 = vcmask 1043456
    %v557 = vsel %vm556, %v555, %v552
    %vm558 = vcmask 1044480
    %v559 = vsel %vm558, %v557, 0.0
    %560 = vst [vmem:[#allocation2] sm:$0xff] %v559
    // Predicated region
    $region22: #{tpu_custom_call.1} parent=1 // pred_check
      _
    $region23: #{tpu_custom_call.1} parent=1 // pred_check_branch
      %562 = sbr.rel (0) target = $region25
    $region24: #{tpu_custom_call.1} parent=1 // pred_region
      %564 = vsyncadd [#allocation3], 0
      %s566 = sshll.u32 [#allocation2], 4
      %s567 = int_to_ptr.vmem [resolvable:$true] %s566
      %s568 = sshll.u32 %s5, 4
      %s569 = int_to_ptr.hbm [resolvable:$true] %s568
      %571 = dma.vmem_to_hbm [thread:$0]  %s567, 128, %s569, [#allocation3]
    $region25: #{tpu_custom_call.1} parent=1 // pred_fallthru
      _
    // Predicated region
    $region26: #{tpu_custom_call.1} parent=1 // pred_check
      _
    $region27: #{tpu_custom_call.1} parent=1 // pred_check_branch
      %573 = sbr.rel (0) target = $region29
    $region28: #{tpu_custom_call.1} parent=1 // pred_region
      %575 = dma.done [#allocation3], 128
    $region29: #{tpu_custom_call.1} parent=1 // pred_fallthru
      _
    %576 = vsyncpa [#allocation3], 1

</llo_original>
